<compile_context>
chip_gen: v7x
topology: tpu7x:2x2x1
jax: 0.10.0
libtpu: 0.0.40
codegen_flags: <defaults>
</compile_context>

<pallas_src>
import math
from functools import partial

import jax
import jax.numpy as jnp
from jax.experimental import pallas as pl
from jax.experimental.pallas import tpu as pltpu


_LANE = 128


# ----------------------------- Pallas kernel ------------------------------

def _log_prob_kernel(mu_ref, x_ref, out_ref, *, std):
    # Normal(mu, std).log_prob(x) = -0.5*((x-mu)/std)^2 - log(std) - 0.5*log(2*pi)
    # Compute in f32 (required on v5e: no bf16 VPU/EUP datapath); the kernel is
    # mem-bound so the casts are free.  Load/store dtype stays the input dtype.
    mu = mu_ref[...].astype(jnp.float32)
    x = x_ref[...].astype(jnp.float32)
    inv_std = jnp.float32(1.0 / std)
    const = jnp.float32(-math.log(std) - 0.5 * math.log(2.0 * math.pi))
    z = (x - mu) * inv_std
    out_ref[...] = (-0.5 * z * z + const).astype(out_ref.dtype)


# ----------------------------- layout helpers -----------------------------

def _lane_dense_2d(x):
    """Flatten to (rows, cols) with cols a large multiple of 128 (lane-dense).

    Returns (slab, pad) where pad is the number of trailing padded elements
    (only nonzero on the fallback path for totals not divisible by 128).
    """
    total = x.size
    flat = x.reshape(-1)
    for cols in (4096, 2048, 1024, 512, 256, 128):
        if total % cols == 0:
            return flat.reshape(total // cols, cols), 0
    # Fallback: pad flat to a multiple of 128 (one extra XLA pad/slice pass).
    padded = ((total + _LANE - 1) // _LANE) * _LANE
    pad = padded - total
    flat = jnp.pad(flat, (0, pad))
    return flat.reshape(padded // _LANE, _LANE), pad


def _pick_tile(dim, candidates):
    for c in candidates:
        if dim % c == 0:
            return c
    return None


# ------------------------------ log_prob wrap ------------------------------

def _pallas_log_prob(mu, x, std):
    if x.shape != mu.shape:
        mu, x = jnp.broadcast_arrays(mu, x)
    out_dtype = jnp.result_type(mu.dtype, x.dtype)
    out_shape = mu.shape
    total = mu.size

    mu2d, pad = _lane_dense_2d(mu)
    x2d, _ = _lane_dense_2d(x)
    rows, cols = mu2d.shape

    # Tile sizes: per-operand tile <= 512*1024*4B = 2 MiB, 3 operands x 2
    # pipeline buffers = 12 MiB — fits the default scoped-VMEM budget on
    # v5e/v6e/v7x while staying near the HBM roofline.
    tc = _pick_tile(cols, (1024, 512, 256, 128)) or cols
    tr = _pick_tile(rows, (512, 256, 128, 64, 32, 16, 8))
    if tr is None:
        tr = rows if rows < 8 else 8  # cdiv grid; Pallas masks edge blocks
    grid = (pl.cdiv(rows, tr), pl.cdiv(cols, tc))

    out2d = pl.pallas_call(
        partial(_log_prob_kernel, std=float(std)),
        out_shape=jax.ShapeDtypeStruct((rows, cols), out_dtype),
        grid=grid,
        in_specs=[
            pl.BlockSpec((tr, tc), lambda i, j: (i, j)),
            pl.BlockSpec((tr, tc), lambda i, j: (i, j)),
        ],
        out_specs=pl.BlockSpec((tr, tc), lambda i, j: (i, j)),
        compiler_params=pltpu.CompilerParams(
            dimension_semantics=("parallel", "parallel")),
    )(mu2d, x2d)

    flat = out2d.reshape(-1)
    if pad:
        flat = flat[:total]
    return flat.reshape(out_shape)


# --------------------------- Distribution glue ----------------------------

class NormalFixed:
    """Thin stand-in for td.Normal(mu, std); log_prob goes through Pallas."""

    # TODO(synk): sample/cdf/entropy of the full Distribution API not needed by
    # the module's forward and are not implemented.

    def __init__(self, mu, std):
        self.mu = mu
        self.std = float(std)

    @property
    def mean(self):
        # p.mean == mu: pure identity, no kernel / no HBM traffic.
        return self.mu

    @property
    def stddev(self):
        return jnp.full(self.mu.shape, self.std, dtype=self.mu.dtype)

    def log_prob(self, x):
        return _pallas_log_prob(self.mu, x, self.std)


class NormalMeanLikelihoodFixed:
    std = None

    def __init__(self, domain_size):
        if isinstance(domain_size, list):
            domain_size = int(math.prod(domain_size))
        self._domain_size = domain_size
        self.std = NormalMeanLikelihoodFixed.std

    @classmethod
    def create(cls, std):
        cls.std = std
        return cls

    @property
    def domain_size(self):
        return self._domain_size

    @property
    def params_size(self):
        return self._domain_size

    def forward(self, logits, return_mean=False, dim=1):
        mu = logits
        p = NormalFixed(mu, self.std)
        if return_mean:
            return (p.mean, p)
        else:
            return p

    __call__ = forward


# --------------------------------- main -----------------------------------

if __name__ == "__main__":
    key = jax.random.PRNGKey(0)
    k1, k2 = jax.random.split(key)

    # NCHW logits, small shapes (batch=2, channels=4, spatial=16x16).
    N, C, H, W = 2, 4, 16, 16
    logits = jax.random.normal(k1, (N, C, H, W), dtype=jnp.float32)
    x_obs = jax.random.normal(k2, (N, C, H, W), dtype=jnp.float32)

    # Fixed std set via the classmethod, as in the PyTorch module.
    lik_cls = NormalMeanLikelihoodFixed.create(0.5)
    lik = lik_cls(domain_size=[C, H, W])

    mean_out, p = lik(logits, return_mean=True)
    lp = p.log_prob(x_obs)

    jax.block_until_ready(mean_out)
    jax.block_until_ready(lp)

    # Correctness checks against a plain-JAX reference.
    assert mean_out.shape == logits.shape and mean_out.dtype == logits.dtype
    assert bool(jnp.allclose(mean_out, logits))
    assert lp.shape == logits.shape and lp.dtype == logits.dtype
    std = 0.5
    ref_lp = (-0.5 * ((x_obs - logits) / std) ** 2
              - math.log(std) - 0.5 * math.log(2.0 * math.pi))
    assert bool(jnp.allclose(lp, ref_lp, atol=1e-5, rtol=1e-5))

    print("KERNEL_OK")
</pallas_src>

<mosaic_0001>
module attributes {stable_mosaic.version = 11 : i64} {
  func.func @_log_prob_kernel(%arg0: i32, %arg1: i32, %arg2: memref<1x1024xf32, #tpu.memory_space<vmem>>, %arg3: memref<1x1024xf32, #tpu.memory_space<vmem>>, %arg4: memref<1x1024xf32, #tpu.memory_space<vmem>>) attributes {dimension_semantics = [#tpu.dimension_semantics<parallel>, #tpu.dimension_semantics<parallel>], iteration_bounds = array<i64: 1, 2>, scalar_prefetch = 0 : i64, scratch_operands = 0 : i64, tpu.core_type = #tpu.core_type<tc>, window_params = [{transform_indices = @transform_0, window_bounds = array<i64: 1, 1024>}, {transform_indices = @transform_1, window_bounds = array<i64: 1, 1024>}, {transform_indices = @transform_2, window_bounds = array<i64: 1, 1024>}]} {
    %c0 = arith.constant 0 : index
    %c0_0 = arith.constant 0 : index
    %0 = vector.load %arg2[%c0, %c0_0] : memref<1x1024xf32, #tpu.memory_space<vmem>>, vector<1x1024xf32>
    %c0_1 = arith.constant 0 : index
    %c0_2 = arith.constant 0 : index
    %1 = vector.load %arg3[%c0_1, %c0_2] : memref<1x1024xf32, #tpu.memory_space<vmem>>, vector<1x1024xf32>
    %2 = arith.subf %1, %0 : vector<1x1024xf32>
    %cst = arith.constant 2.000000e+00 : f32
    %3 = vector.broadcast %cst : f32 to vector<1x1024xf32>
    %4 = arith.mulf %2, %3 : vector<1x1024xf32>
    %cst_3 = arith.constant -5.000000e-01 : f32
    %5 = vector.broadcast %cst_3 : f32 to vector<1x1024xf32>
    %6 = arith.mulf %5, %4 : vector<1x1024xf32>
    %7 = arith.mulf %6, %4 : vector<1x1024xf32>
    %cst_4 = arith.constant -0.22579135 : f32
    %8 = vector.broadcast %cst_4 : f32 to vector<1x1024xf32>
    %9 = arith.addf %7, %8 : vector<1x1024xf32>
    %c0_5 = arith.constant 0 : index
    %c0_6 = arith.constant 0 : index
    %10 = vector.load %arg4[%c0_5, %c0_6] : memref<1x1024xf32, #tpu.memory_space<vmem>>, vector<1x1024xf32>
    tpu.vector_store %arg4[%c0_5, %c0_6], %9 {strides = array<i32>} : memref<1x1024xf32, #tpu.memory_space<vmem>>, vector<1x1024xf32>,
    return
  }
  func.func @transform_0(%arg0: i32, %arg1: i32) -> (i32, i32) {
    %c0_i32 = arith.constant 0 : i32
    return %arg0, %arg1 : i32, i32
  }
  func.func @transform_1(%arg0: i32, %arg1: i32) -> (i32, i32) {
    %c0_i32 = arith.constant 0 : i32
    return %arg0, %arg1 : i32, i32
  }
  func.func @transform_2(%arg0: i32, %arg1: i32) -> (i32, i32) {
    %c0_i32 = arith.constant 0 : i32
    return %arg0, %arg1 : i32, i32
  }
}

</mosaic_0001>

<llo_original>
// kernel: tpu_custom_call.1
$region0: #{tpu_custom_call.1}
  #allocation0 [shape = 'u32[]', space=smem, size = 0x4, offset = 0x4, fixed_abs, tag = 'smem constant byte address 0x4 - core index']
  #allocation1 [shape = 'u32[144,128]{1,0:T(1,128)}', space=vmem, size = 0x12000, scoped, tag = 'internal scratch']
  %s0 = inlined_call_operand.hbm [shape: f32[1,2048], index: 0, kind: input, shape index: {}]
  %s1 = inlined_call_operand.hbm [shape: f32[1,2048], index: 1, kind: input, shape index: {}]
  %s2 = inlined_call_operand.hbm [shape: f32[1,2048], index: 2, kind: output, shape index: {}]
  %s3 = sld [smem:[#allocation0]]
  $region49: #{tpu_custom_call.1} parent=0
    _
  %s5 = ssub.s32 1, %s3
  %s6 = scalar_select 0, %s5, %s3
  $region1: #{tpu_custom_call.1} parent=0
    #allocation2 [shape = 'u8[8192]{0}', space=vmem, size = 0x2000, scoped, tag = 'input window, operand 0']
    #allocation3 [shape = 's32[2]{0}', space=sflag, size = 0x8, scoped, tag = 'scoped memory for tpu_custom_call.1']
    #allocation4 [shape = 's32[2]{0}', space=sflag, size = 0x8, scoped, tag = 'scoped memory for tpu_custom_call.1']
    #allocation5 [shape = 'u8[8192]{0}', space=vmem, size = 0x2000, scoped, tag = 'input window, operand 1']
    #allocation6 [shape = 's32[2]{0}', space=sflag, size = 0x8, scoped, tag = 'scoped memory for tpu_custom_call.1']
    #allocation7 [shape = 'u8[8192]{0}', space=vmem, size = 0x2000, scoped, tag = 'output window, operand 0']
    %7 = vsyncpa [#allocation3], 0
    %s8 = scalar_lea.sflag [#allocation3], 1
    %9 = vsyncpa %s8, 0
    %10 = vsyncpa [#allocation6], 0
    %s11 = scalar_lea.sflag [#allocation6], 1
    %12 = vsyncpa %s11, 0
    %13 = vsyncpa [#allocation4], 0
    %s14 = scalar_lea.sflag [#allocation4], 1
    %15 = vsyncpa %s14, 0
    loop: start=0, step=1, limit=4
    $region2: #{tpu_custom_call.1} parent=1 // loop_pre_header
      _
    $region3: #{tpu_custom_call.1} parent=1 // loop_header
      %s17 = sphi 0, %s21
      %p18 = scmp.ge.s32.totalorder %s17, 4
      %s24 = sphi 0, %s36
      %s25 = sphi 0, %s32
      %s26 = sphi 0, %s24
      %s27 = sphi 0, %s25
      %s28 = sphi 0, %s26
      %s29 = sphi 0, %s27
      %s41 = sphi 0, %s43
      %s44 = sphi 0, %s41
      %s45 = sphi 0, %s44
      %s61 = sphi 0, %s45
      %s69 = sphi 0, %s71
      %s72 = sphi 0, %s69
      %s73 = sphi 0, %s72
      %s89 = sphi 0, %s73
      %s97 = sphi 0, %s99
      %s100 = sphi 0, %s97
      %s101 = sphi 0, %s100
      %s117 = sphi 0, %s101
    $region4: #{tpu_custom_call.1} parent=1 // loop_header_branch
      %20 = sbr.rel (%p18) target = $region8
    $region5: #{tpu_custom_call.1} parent=1 // loop_body
      %s22 = ssub.s32 %s17, 1
      %s23 = ssub.s32 %s17, 2
      %s30 = sadd.s32 1, %s25
      %p31 = scmp.ge.s32.totalorder %s30, 2
      %s32 = scalar_select %p31, 0, %s30
      %s33 = sadd.s32 1, %s24
      %s34 = scalar_select %p31, %s33, %s24
      %p35 = scmp.ge.s32.totalorder %s34, 1
      %s36 = scalar_select %p35, 0, %s34
      %s37 = ssub.s32 %s24, %s36
      %s38 = ssub.s32 %s25, %s32
      %s39 = sor.u32 %s37, %s38
      %p40 = scmp.eq.s32.totalorder %s39, 0
      %s42 = sadd.s32 %s41, 1
      %s43 = scalar_select %p40, %s41, %s42
      %p46 = pneg %p40
      %p47 = scmp.eq.s32.totalorder %s17, 1
      %p48 = por %p46, %p47
      %p49 = scmp.ne.s32.totalorder %s41, %s44
      %p50 = scmp.eq.s32.totalorder %s17, 0
      %p51 = por %p49, %p50
      %p52 = scmp.ne.s32.totalorder %s41, %s44
      %p53 = scmp.eq.s32.totalorder %s22, 1
      %p54 = por %p52, %p53
      %p55 = scmp.ne.s32.totalorder %s44, %s45
      %p56 = scmp.eq.s32.totalorder %s22, 0
      %p57 = por %p55, %p56
      %p58 = scmp.ne.s32.totalorder %s44, %s45
      %p59 = scmp.eq.s32.totalorder %s23, 1
      %p60 = por %p58, %p59
      %p62 = scmp.ne.s32.totalorder %s45, %s61
      %p63 = scmp.eq.s32.totalorder %s23, 0
      %p64 = por %p62, %p63
      %s65 = ssub.s32 %s24, %s36
      %s66 = ssub.s32 %s25, %s32
      %s67 = sor.u32 %s65, %s66
      %p68 = scmp.eq.s32.totalorder %s67, 0
      %s70 = sadd.s32 %s69, 1
      %s71 = scalar_select %p68, %s69, %s70
      %p74 = pneg %p68
      %p75 = scmp.eq.s32.totalorder %s17, 1
      %p76 = por %p74, %p75
      %p77 = scmp.ne.s32.totalorder %s69, %s72
      %p78 = scmp.eq.s32.totalorder %s17, 0
      %p79 = por %p77, %p78
      %p80 = scmp.ne.s32.totalorder %s69, %s72
      %p81 = scmp.eq.s32.totalorder %s22, 1
      %p82 = por %p80, %p81
      %p83 = scmp.ne.s32.totalorder %s72, %s73
      %p84 = scmp.eq.s32.totalorder %s22, 0
      %p85 = por %p83, %p84
      %p86 = scmp.ne.s32.totalorder %s72, %s73
      %p87 = scmp.eq.s32.totalorder %s23, 1
      %p88 = por %p86, %p87
      %p90 = scmp.ne.s32.totalorder %s73, %s89
      %p91 = scmp.eq.s32.totalorder %s23, 0
      %p92 = por %p90, %p91
      %s93 = ssub.s32 %s24, %s36
      %s94 = ssub.s32 %s25, %s32
      %s95 = sor.u32 %s93, %s94
      %p96 = scmp.eq.s32.totalorder %s95, 0
      %s98 = sadd.s32 %s97, 1
      %s99 = scalar_select %p96, %s97, %s98
      %p102 = pneg %p96
      %p103 = scmp.eq.s32.totalorder %s17, 1
      %p104 = por %p102, %p103
      %p105 = scmp.ne.s32.totalorder %s97, %s100
      %p106 = scmp.eq.s32.totalorder %s17, 0
      %p107 = por %p105, %p106
      %p108 = scmp.ne.s32.totalorder %s97, %s100
      %p109 = scmp.eq.s32.totalorder %s22, 1
      %p110 = por %p108, %p109
      %p111 = scmp.ne.s32.totalorder %s100, %s101
      %p112 = scmp.eq.s32.totalorder %s22, 0
      %p113 = por %p111, %p112
      %p114 = scmp.ne.s32.totalorder %s100, %s101
      %p115 = scmp.eq.s32.totalorder %s23, 1
      %p116 = por %p114, %p115
      %p118 = scmp.ne.s32.totalorder %s101, %s117
      %p119 = scmp.eq.s32.totalorder %s23, 0
      %p120 = por %p118, %p119
      %p121 = scmp.le.s32.totalorder 1, %s17
      %p122 = scmp.lt.s32.totalorder %s17, 3
      %p123 = pnand %p121, %p122
      %p124 = pneg %p123
      // Predicated region
      $region9: #{tpu_custom_call.1} parent=5 // pred_check
        _
      $region10: #{tpu_custom_call.1} parent=5 // pred_check_branch
        %126 = sbr.rel (%p123) target = $region12
      $region11: #{tpu_custom_call.1} parent=5 // pred_region
        %s127 = ssub.s32 %s17, 1
      $region12: #{tpu_custom_call.1} parent=5 // pred_fallthru
        _
      %p128 = scmp.lt.s32.totalorder %s17, 2
      // Predicated region
      $region13: #{tpu_custom_call.1} parent=5 // pred_check
        %p129 = pneg %p128
      $region14: #{tpu_custom_call.1} parent=5 // pred_check_branch
        %131 = sbr.rel (%p129) target = $region16
      $region15: #{tpu_custom_call.1} parent=5 // pred_region
        // Predicated region
        $region17: #{tpu_custom_call.1} parent=15 // pred_check
          %p132 = pneg %p51
        $region18: #{tpu_custom_call.1} parent=15 // pred_check_branch
          %134 = sbr.rel (%p132) target = $region20
        $region19: #{tpu_custom_call.1} parent=15 // pred_region
          %s135 = sand.u32 %s41, 1
          %s136 = scalar_lea.sflag [#allocation3], %s135
          %s137 = sand.u32 %s41, 1
          %s138 = smul.addr %s137, 8
          %s139 = scalar_lea.vmem [#allocation2], %s138
          %s140 = smul.u32 8, %s25
          %s142 = ssub.s32 128, 128
          %143 = vsyncadd %s136, %s142
          %s144 = smul.addr %s24, 16
          %s145 = sadd.s32 %s140, %s144
          %s146 = smul.addr %s145, 16
          %s147 = scalar_lea.hbm %s0, %s146
          %s149 = sshll.u32 %s139, 4
          %s150 = int_to_ptr.vmem [resolvable:$true] %s149
          %152 = dma.hbm_to_vmem [thread:$0]  %s147, 128, %s150, %s136
        $region20: #{tpu_custom_call.1} parent=15 // pred_fallthru
          _
        // Predicated region
        $region21: #{tpu_custom_call.1} parent=15 // pred_check
          %p153 = pneg %p79
        $region22: #{tpu_custom_call.1} parent=15 // pred_check_branch
          %155 = sbr.rel (%p153) target = $region24
        $region23: #{tpu_custom_call.1} parent=15 // pred_region
          %s156 = sand.u32 %s69, 1
          %s157 = scalar_lea.sflag [#allocation6], %s156
          %s158 = sand.u32 %s69, 1
          %s159 = smul.addr %s158, 8
          %s160 = scalar_lea.vmem [#allocation5], %s159
          %s161 = smul.u32 8, %s25
          %s163 = ssub.s32 128, 128
          %164 = vsyncadd %s157, %s163
          %s165 = smul.addr %s24, 16
          %s166 = sadd.s32 %s161, %s165
          %s167 = smul.addr %s166, 16
          %s168 = scalar_lea.hbm %s1, %s167
          %s170 = sshll.u32 %s160, 4
          %s171 = int_to_ptr.vmem [resolvable:$true] %s170
          %173 = dma.hbm_to_vmem [thread:$0]  %s168, 128, %s171, %s157
        $region24: #{tpu_custom_call.1} parent=15 // pred_fallthru
          _
      $region16: #{tpu_custom_call.1} parent=5 // pred_fallthru
        _
      %p174 = scmp.le.s32.totalorder 1, %s17
      %p175 = scmp.lt.s32.totalorder %s17, 3
      %p176 = pnand %p174, %p175
      %p177 = pneg %p176
      // Predicated region
      $region25: #{tpu_custom_call.1} parent=5 // pred_check
        _
      $region26: #{tpu_custom_call.1} parent=5 // pred_check_branch
        %179 = sbr.rel (%p176) target = $region28
      $region27: #{tpu_custom_call.1} parent=5 // pred_region
        %s180 = ssub.s32 %s17, 1
        %s181 = sand.u32 %s44, 1
        %s182 = scalar_lea.sflag [#allocation3], %s181
        %s183 = sand.u32 %s44, 1
        %s184 = smul.addr %s183, 8
        %s185 = scalar_lea.vmem [#allocation2], %s184
        // Predicated region
        $region29: #{tpu_custom_call.1} parent=27 // pred_check
          %p186 = pneg %p57
        $region30: #{tpu_custom_call.1} parent=27 // pred_check_branch
          %188 = sbr.rel (%p186) target = $region32
        $region31: #{tpu_custom_call.1} parent=27 // pred_region
          %189 = dma.done %s182, 128
        $region32: #{tpu_custom_call.1} parent=27 // pred_fallthru
          _
        %s190 = sand.u32 %s72, 1
        %s191 = scalar_lea.sflag [#allocation6], %s190
        %s192 = sand.u32 %s72, 1
        %s193 = smul.addr %s192, 8
        %s194 = scalar_lea.vmem [#allocation5], %s193
        // Predicated region
        $region33: #{tpu_custom_call.1} parent=27 // pred_check
          %p195 = pneg %p85
        $region34: #{tpu_custom_call.1} parent=27 // pred_check_branch
          %197 = sbr.rel (%p195) target = $region36
        $region35: #{tpu_custom_call.1} parent=27 // pred_region
          %198 = dma.done %s191, 128
        $region36: #{tpu_custom_call.1} parent=27 // pred_fallthru
          _
        %s199 = sand.u32 %s44, 1
        %s200 = scalar_lea.sflag [#allocation3], %s199
        %s201 = sand.u32 %s44, 1
        %s202 = smul.addr %s201, 8
        %s203 = scalar_lea.vmem [#allocation2], %s202
        %p204 = pneg %p57
        %p205 = pneg %p54
        %s206 = sand.u32 %s72, 1
        %s207 = scalar_lea.sflag [#allocation6], %s206
        %s208 = sand.u32 %s72, 1
        %s209 = smul.addr %s208, 8
        %s210 = scalar_lea.vmem [#allocation5], %s209
        %p211 = pneg %p85
        %p212 = pneg %p82
        %p213 = pneg %p113
        %p214 = pneg %p110
        %s215 = sand.u32 %s100, 1
        %s216 = scalar_lea.sflag [#allocation4], %s215
        %s217 = sand.u32 %s100, 1
        %s218 = smul.addr %s217, 8
        %s219 = scalar_lea.vmem [#allocation7], %s218
        %s220 = smul.u32 8, %s27
        %s221 = smul.u32 8, %s27
        %s222 = smul.u32 8, %s27
        %v223 = vld [vmem:[%s185] sm:$0xff]
        %v224 = vld [vmem:[%s194] sm:$0xff]
        %v225 = vsub.f32 %v224, %v223
        %v226 = vmul.f32 %v225, 2.0
        %v227 = vmul.f32 %v226, -0.5
        %v228 = vmul.f32 %v227, %v226
        %v229 = vadd.f32 %v228, -0.22579135
        %230 = vst [vmem:[%s219] sm:$0xff] %v229
        %s231 = sand.u32 %s100, 1
        %s232 = scalar_lea.sflag [#allocation4], %s231
        %s233 = sand.u32 %s100, 1
        %s234 = smul.addr %s233, 8
        %s235 = scalar_lea.vmem [#allocation7], %s234
        // Predicated region
        $region37: #{tpu_custom_call.1} parent=27 // pred_check
          %p236 = pneg %p110
        $region38: #{tpu_custom_call.1} parent=27 // pred_check_branch
          %238 = sbr.rel (%p236) target = $region40
        $region39: #{tpu_custom_call.1} parent=27 // pred_region
          %s239 = smul.u32 8, %s27
          %s241 = ssub.s32 128, 128
          %242 = vsyncadd %s232, %s241
          %s243 = smul.addr %s26, 16
          %s244 = sadd.s32 %s239, %s243
          %s245 = smul.addr %s244, 16
          %s246 = scalar_lea.hbm %s2, %s245
          %s248 = sshll.u32 %s235, 4
          %s249 = int_to_ptr.vmem [resolvable:$true] %s248
          %251 = dma.vmem_to_hbm [thread:$0]  %s249, 128, %s246, %s232
        $region40: #{tpu_custom_call.1} parent=27 // pred_fallthru
          _
      $region28: #{tpu_custom_call.1} parent=5 // pred_fallthru
        _
      %p252 = scmp.le.s32.totalorder 2, %s17
      // Predicated region
      $region41: #{tpu_custom_call.1} parent=5 // pred_check
        %p253 = pneg %p252
      $region42: #{tpu_custom_call.1} parent=5 // pred_check_branch
        %255 = sbr.rel (%p253) target = $region44
      $region43: #{tpu_custom_call.1} parent=5 // pred_region
        %s256 = ssub.s32 %s17, 2
        // Predicated region
        $region45: #{tpu_custom_call.1} parent=43 // pred_check
          %p257 = pneg %p116
        $region46: #{tpu_custom_call.1} parent=43 // pred_check_branch
          %259 = sbr.rel (%p257) target = $region48
        $region47: #{tpu_custom_call.1} parent=43 // pred_region
          %s260 = sand.u32 %s101, 1
          %s261 = scalar_lea.sflag [#allocation4], %s260
          %s262 = sand.u32 %s101, 1
          %s263 = smul.addr %s262, 8
          %s264 = scalar_lea.vmem [#allocation7], %s263
          %265 = dma.done %s261, 128
        $region48: #{tpu_custom_call.1} parent=43 // pred_fallthru
          _
      $region44: #{tpu_custom_call.1} parent=5 // pred_fallthru
        _
    $region6: #{tpu_custom_call.1} parent=1 // loop_footer
      %s21 = sadd.s32 1, %s17
    $region7: #{tpu_custom_call.1} parent=1 // loop_footer_branch
      %16 = sbr.rel target = $region3
    $region8: #{tpu_custom_call.1} parent=1 // loop_exit
      _
    %266 = vsyncpa [#allocation3], 1
    %s267 = scalar_lea.sflag [#allocation3], 1
    %268 = vsyncpa %s267, 1
    %269 = vsyncpa [#allocation6], 1
    %s270 = scalar_lea.sflag [#allocation6], 1
    %271 = vsyncpa %s270, 1
    %272 = vsyncpa [#allocation4], 1
    %s273 = scalar_lea.sflag [#allocation4], 1
    %274 = vsyncpa %s273, 1

</llo_original>
